<compile_context>
chip_gen: v7x
topology: tpu7x:2x2x1
jax: 0.10.0
libtpu: 0.0.40
codegen_flags: <defaults>
</compile_context>

<pallas_src>
import jax
import jax.numpy as jnp
from jax.experimental import pallas as pl
from jax.experimental.pallas import tpu as pltpu


LAYER_SIZES = [20, 50, 90, 30, 10, 1]   # input -> 20 -> 50 -> 90 -> 30 -> 10 -> 1
NUM_LAYERS = len(LAYER_SIZES)
PAD = 128                               # lane-aligned width for all hidden layers


def _round_up(x, m):
    return ((x + m - 1) // m) * m


def _mlp_kernel(x_ref, w0_ref, w_ref, b_ref, o_ref):
    """x_ref: (B, IN_PAD) f32; w0_ref: (IN_PAD, 128) bf16; w_ref: (5, 128, 128) bf16;
    b_ref: (6, 1, 128) f32; o_ref: (B, 1) f32.  Whole forward pass fused."""
    # Layer 1: fully aligned, no weight slicing (padded rows of W0 are zero).
    h = jnp.dot(x_ref[...].astype(jnp.bfloat16), w0_ref[...],
                preferred_element_type=jnp.float32)
    h = jnp.maximum(h + b_ref[0], 0.0).astype(jnp.bfloat16)       # (B, 128) bf16

    # Layers 2..5: lane-aligned 128x128 matmuls, bf16-carried intermediates.
    for l in range(1, NUM_LAYERS - 1):
        h = jnp.dot(h, w_ref[l - 1], preferred_element_type=jnp.float32)
        h = jnp.maximum(h + b_ref[l], 0.0).astype(jnp.bfloat16)

    # Layer 6: keep the f32 epilogue for the stored output.
    h = jnp.dot(h, w_ref[NUM_LAYERS - 2], preferred_element_type=jnp.float32)
    h = jnp.maximum(h + b_ref[NUM_LAYERS - 1], 0.0)

    # Real output lives in column 0; padded columns are exactly zero.
    # TODO(synk): if profiling on v5e shows vst.msk pressure, write a lane-dense
    # (B/128, 128) slab instead of the width-1 column.
    o_ref[...] = h[:, 0:1].astype(o_ref.dtype)


def prescriptive_model_forward(x, w0_packed, w_packed, b_packed, *, block_b=2048):
    """x: (batch, input_size) f32.  w0_packed: (IN_PAD, 128) bf16.
    w_packed: (5, 128, 128) bf16.  b_packed: (6, 1, 128) f32."""
    batch, in_dim = x.shape
    in_pad = w0_packed.shape[0]
    assert in_dim <= in_pad, (in_dim, in_pad)
    if in_dim != in_pad:
        # One-time column zero-pad (only when input_size % 16 != 0); exact since
        # the corresponding W0 rows are zero.  No-op for the common aligned case.
        x = jnp.pad(x, ((0, 0), (0, in_pad - in_dim)))

    # Batch block: as large as possible (amortize per-step overhead + MXU weight
    # reloads), but guarantee >=2 grid blocks on reasonably sized batches so both
    # v7x TensorCores get work (harmless on single-TC v5e/v6e).
    bb = min(block_b, _round_up(batch, 8))
    if batch >= 256:
        bb = min(bb, _round_up(-(-batch // 2), 8))
    num_blocks = -(-batch // bb)

    out = pl.pallas_call(
        _mlp_kernel,
        out_shape=jax.ShapeDtypeStruct((batch, 1), jnp.float32),
        grid=(num_blocks,),
        in_specs=[
            # x streams in batch blocks; ragged final block handled by Pallas
            # (rows are independent, OOB output rows are dropped).
            pl.BlockSpec((bb, in_pad), lambda i: (i, 0)),
            # Weight/bias slabs: constant block index -> stay VMEM-resident.
            pl.BlockSpec(w0_packed.shape, lambda i: (0, 0)),
            pl.BlockSpec(w_packed.shape, lambda i: (0, 0, 0)),
            pl.BlockSpec(b_packed.shape, lambda i: (0, 0, 0)),
        ],
        out_specs=pl.BlockSpec((bb, 1), lambda i: (i, 0)),
        compiler_params=pltpu.CompilerParams(
            dimension_semantics=("parallel",),   # megacore sharding on v7x
        ),
    )(x, w0_packed, w_packed, b_packed)
    return out


def init_params(key, input_size):
    """PyTorch nn.Linear default init: U(-1/sqrt(fan_in), +1/sqrt(fan_in)).
    Returns a list of (W (out,in), b (out,)) in the PyTorch layout."""
    params = []
    in_dim = input_size
    for out_dim in LAYER_SIZES:
        key, kw, kb = jax.random.split(key, 3)
        bound = 1.0 / jnp.sqrt(jnp.float32(in_dim))
        w = jax.random.uniform(kw, (out_dim, in_dim), jnp.float32, -bound, bound)
        b = jax.random.uniform(kb, (out_dim,), jnp.float32, -bound, bound)
        params.append((w, b))
        in_dim = out_dim
    return params


def pack_params(params, input_size, w_dtype=jnp.bfloat16):
    """Pack per-layer (W (out,in), b (out,)) into lane-aligned slabs:
    w0_packed: layer-1 (in, out) transpose zero-padded to (round_up(in,16), 128);
    w_packed[l-1]: layer-l transpose zero-padded to (128, 128) for l=2..6;
    b_packed[l]: layer bias zero-padded to (1, 128)."""
    assert input_size <= PAD, "input_size > 128 needs a wider first slab"
    in_pad = _round_up(input_size, 16)           # bf16 sublane pack
    w0_packed = jnp.zeros((in_pad, PAD), w_dtype)
    w_packed = jnp.zeros((NUM_LAYERS - 1, PAD, PAD), w_dtype)
    b_packed = jnp.zeros((NUM_LAYERS, 1, PAD), jnp.float32)

    w0, b0 = params[0]
    w0_packed = w0_packed.at[:input_size, :w0.shape[0]].set(w0.T.astype(w_dtype))
    b_packed = b_packed.at[0, 0, :b0.shape[0]].set(b0.astype(jnp.float32))
    for l in range(1, NUM_LAYERS):
        w, b = params[l]
        out_dim, in_dim = w.shape
        w_packed = w_packed.at[l - 1, :in_dim, :out_dim].set(w.T.astype(w_dtype))
        b_packed = b_packed.at[l, 0, :out_dim].set(b.astype(jnp.float32))
    return w0_packed, w_packed, b_packed


def reference_forward(x, params):
    """Plain-JAX reference with the same numerics (bf16 matmul inputs, f32 acc)."""
    h = x
    for w, b in params:
        h = jnp.dot(h.astype(jnp.bfloat16), w.T.astype(jnp.bfloat16),
                    preferred_element_type=jnp.float32)
        h = jnp.maximum(h + b.astype(jnp.float32), 0.0)
    return h


if __name__ == "__main__":
    key = jax.random.PRNGKey(0)
    batch, input_size = 8, 16

    key, kx = jax.random.split(key)
    x = jax.random.normal(kx, (batch, input_size), jnp.float32)

    params = init_params(key, input_size)
    w0_packed, w_packed, b_packed = pack_params(params, input_size)

    out = prescriptive_model_forward(x, w0_packed, w_packed, b_packed)
    out = jax.block_until_ready(out)

    ref = reference_forward(x, params)
    assert out.shape == (batch, 1), out.shape
    # Kernel and reference share the same bf16-matmul / f32-accumulate numerics.
    assert jnp.allclose(out, ref, atol=1e-2, rtol=1e-2), "mismatch vs reference"

    print("KERNEL_OK")
</pallas_src>

<mosaic_0001>
module attributes {stable_mosaic.version = 11 : i64} {
  func.func @_mlp_kernel(%arg0: i32, %arg1: memref<8x16xf32, #tpu.memory_space<vmem>>, %arg2: memref<16x128xbf16, #tpu.memory_space<vmem>>, %arg3: memref<5x128x128xbf16, #tpu.memory_space<vmem>>, %arg4: memref<6x1x128xf32, #tpu.memory_space<vmem>>, %arg5: memref<8x1xf32, #tpu.memory_space<vmem>>) attributes {dimension_semantics = [#tpu.dimension_semantics<parallel>], iteration_bounds = array<i64: 1>, scalar_prefetch = 0 : i64, scratch_operands = 0 : i64, tpu.core_type = #tpu.core_type<tc>, window_params = [{transform_indices = @transform_0, window_bounds = array<i64: 8, 16>}, {pipeline_mode = #tpu.pipeline_mode<synchronous>, transform_indices = @transform_1, window_bounds = array<i64: 16, 128>}, {pipeline_mode = #tpu.pipeline_mode<synchronous>, transform_indices = @transform_2, window_bounds = array<i64: 5, 128, 128>}, {pipeline_mode = #tpu.pipeline_mode<synchronous>, transform_indices = @transform_3, window_bounds = array<i64: 6, 1, 128>}, {transform_indices = @transform_4, window_bounds = array<i64: 8, 1>}]} {
    %c0 = arith.constant 0 : index
    %c0_0 = arith.constant 0 : index
    %0 = vector.load %arg1[%c0, %c0_0] : memref<8x16xf32, #tpu.memory_space<vmem>>, vector<8x16xf32>
    %1 = arith.truncf %0 : vector<8x16xf32> to vector<8x16xbf16>
    %c0_1 = arith.constant 0 : index
    %c0_2 = arith.constant 0 : index
    %2 = vector.load %arg2[%c0_1, %c0_2] : memref<16x128xbf16, #tpu.memory_space<vmem>>, vector<16x128xbf16>
    %cst = arith.constant dense<0.000000e+00> : vector<8x128xf32>
    %3 = tpu.matmul %1, %2, %cst {dimension_numbers = #tpu.dot_dimension_numbers<[1], [0], [0], [1], [0, 0, 1, 1], [], []>} : vector<8x16xbf16>, vector<16x128xbf16>, vector<8x128xf32> -> vector<8x128xf32>
    %c0_3 = arith.constant 0 : index
    %c0_4 = arith.constant 0 : index
    %c0_5 = arith.constant 0 : index
    %4 = vector.load %arg4[%c0_3, %c0_4, %c0_5] : memref<6x1x128xf32, #tpu.memory_space<vmem>>, vector<1x1x128xf32>
    %5 = vector.shape_cast %4 : vector<1x1x128xf32> to vector<1x128xf32>
    %6 = vector.broadcast %5 : vector<1x128xf32> to vector<8x128xf32>
    %7 = arith.addf %3, %6 : vector<8x128xf32>
    %cst_6 = arith.constant 0.000000e+00 : f32
    %8 = vector.broadcast %cst_6 : f32 to vector<8x128xf32>
    %9 = arith.maximumf %7, %8 : vector<8x128xf32>
    %10 = arith.truncf %9 : vector<8x128xf32> to vector<8x128xbf16>
    %c0_7 = arith.constant 0 : index
    %c0_8 = arith.constant 0 : index
    %c0_9 = arith.constant 0 : index
    %11 = vector.load %arg3[%c0_7, %c0_8, %c0_9] : memref<5x128x128xbf16, #tpu.memory_space<vmem>>, vector<1x128x128xbf16>
    %12 = vector.shape_cast %11 : vector<1x128x128xbf16> to vector<128x128xbf16>
    %cst_10 = arith.constant dense<0.000000e+00> : vector<8x128xf32>
    %13 = tpu.matmul %10, %12, %cst_10 {dimension_numbers = #tpu.dot_dimension_numbers<[1], [0], [0], [1], [0, 0, 1, 1], [], []>} : vector<8x128xbf16>, vector<128x128xbf16>, vector<8x128xf32> -> vector<8x128xf32>
    %c1 = arith.constant 1 : index
    %c0_11 = arith.constant 0 : index
    %c0_12 = arith.constant 0 : index
    %14 = vector.load %arg4[%c1, %c0_11, %c0_12] : memref<6x1x128xf32, #tpu.memory_space<vmem>>, vector<1x1x128xf32>
    %15 = vector.shape_cast %14 : vector<1x1x128xf32> to vector<1x128xf32>
    %16 = vector.broadcast %15 : vector<1x128xf32> to vector<8x128xf32>
    %17 = arith.addf %13, %16 : vector<8x128xf32>
    %cst_13 = arith.constant 0.000000e+00 : f32
    %18 = vector.broadcast %cst_13 : f32 to vector<8x128xf32>
    %19 = arith.maximumf %17, %18 : vector<8x128xf32>
    %20 = arith.truncf %19 : vector<8x128xf32> to vector<8x128xbf16>
    %c1_14 = arith.constant 1 : index
    %c0_15 = arith.constant 0 : index
    %c0_16 = arith.constant 0 : index
    %21 = vector.load %arg3[%c1_14, %c0_15, %c0_16] : memref<5x128x128xbf16, #tpu.memory_space<vmem>>, vector<1x128x128xbf16>
    %22 = vector.shape_cast %21 : vector<1x128x128xbf16> to vector<128x128xbf16>
    %cst_17 = arith.constant dense<0.000000e+00> : vector<8x128xf32>
    %23 = tpu.matmul %20, %22, %cst_17 {dimension_numbers = #tpu.dot_dimension_numbers<[1], [0], [0], [1], [0, 0, 1, 1], [], []>} : vector<8x128xbf16>, vector<128x128xbf16>, vector<8x128xf32> -> vector<8x128xf32>
    %c2 = arith.constant 2 : index
    %c0_18 = arith.constant 0 : index
    %c0_19 = arith.constant 0 : index
    %24 = vector.load %arg4[%c2, %c0_18, %c0_19] : memref<6x1x128xf32, #tpu.memory_space<vmem>>, vector<1x1x128xf32>
    %25 = vector.shape_cast %24 : vector<1x1x128xf32> to vector<1x128xf32>
    %26 = vector.broadcast %25 : vector<1x128xf32> to vector<8x128xf32>
    %27 = arith.addf %23, %26 : vector<8x128xf32>
    %cst_20 = arith.constant 0.000000e+00 : f32
    %28 = vector.broadcast %cst_20 : f32 to vector<8x128xf32>
    %29 = arith.maximumf %27, %28 : vector<8x128xf32>
    %30 = arith.truncf %29 : vector<8x128xf32> to vector<8x128xbf16>
    %c2_21 = arith.constant 2 : index
    %c0_22 = arith.constant 0 : index
    %c0_23 = arith.constant 0 : index
    %31 = vector.load %arg3[%c2_21, %c0_22, %c0_23] : memref<5x128x128xbf16, #tpu.memory_space<vmem>>, vector<1x128x128xbf16>
    %32 = vector.shape_cast %31 : vector<1x128x128xbf16> to vector<128x128xbf16>
    %cst_24 = arith.constant dense<0.000000e+00> : vector<8x128xf32>
    %33 = tpu.matmul %30, %32, %cst_24 {dimension_numbers = #tpu.dot_dimension_numbers<[1], [0], [0], [1], [0, 0, 1, 1], [], []>} : vector<8x128xbf16>, vector<128x128xbf16>, vector<8x128xf32> -> vector<8x128xf32>
    %c3 = arith.constant 3 : index
    %c0_25 = arith.constant 0 : index
    %c0_26 = arith.constant 0 : index
    %34 = vector.load %arg4[%c3, %c0_25, %c0_26] : memref<6x1x128xf32, #tpu.memory_space<vmem>>, vector<1x1x128xf32>
    %35 = vector.shape_cast %34 : vector<1x1x128xf32> to vector<1x128xf32>
    %36 = vector.broadcast %35 : vector<1x128xf32> to vector<8x128xf32>
    %37 = arith.addf %33, %36 : vector<8x128xf32>
    %cst_27 = arith.constant 0.000000e+00 : f32
    %38 = vector.broadcast %cst_27 : f32 to vector<8x128xf32>
    %39 = arith.maximumf %37, %38 : vector<8x128xf32>
    %40 = arith.truncf %39 : vector<8x128xf32> to vector<8x128xbf16>
    %c3_28 = arith.constant 3 : index
    %c0_29 = arith.constant 0 : index
    %c0_30 = arith.constant 0 : index
    %41 = vector.load %arg3[%c3_28, %c0_29, %c0_30] : memref<5x128x128xbf16, #tpu.memory_space<vmem>>, vector<1x128x128xbf16>
    %42 = vector.shape_cast %41 : vector<1x128x128xbf16> to vector<128x128xbf16>
    %cst_31 = arith.constant dense<0.000000e+00> : vector<8x128xf32>
    %43 = tpu.matmul %40, %42, %cst_31 {dimension_numbers = #tpu.dot_dimension_numbers<[1], [0], [0], [1], [0, 0, 1, 1], [], []>} : vector<8x128xbf16>, vector<128x128xbf16>, vector<8x128xf32> -> vector<8x128xf32>
    %c4 = arith.constant 4 : index
    %c0_32 = arith.constant 0 : index
    %c0_33 = arith.constant 0 : index
    %44 = vector.load %arg4[%c4, %c0_32, %c0_33] : memref<6x1x128xf32, #tpu.memory_space<vmem>>, vector<1x1x128xf32>
    %45 = vector.shape_cast %44 : vector<1x1x128xf32> to vector<1x128xf32>
    %46 = vector.broadcast %45 : vector<1x128xf32> to vector<8x128xf32>
    %47 = arith.addf %43, %46 : vector<8x128xf32>
    %cst_34 = arith.constant 0.000000e+00 : f32
    %48 = vector.broadcast %cst_34 : f32 to vector<8x128xf32>
    %49 = arith.maximumf %47, %48 : vector<8x128xf32>
    %50 = arith.truncf %49 : vector<8x128xf32> to vector<8x128xbf16>
    %c4_35 = arith.constant 4 : index
    %c0_36 = arith.constant 0 : index
    %c0_37 = arith.constant 0 : index
    %51 = vector.load %arg3[%c4_35, %c0_36, %c0_37] : memref<5x128x128xbf16, #tpu.memory_space<vmem>>, vector<1x128x128xbf16>
    %52 = vector.shape_cast %51 : vector<1x128x128xbf16> to vector<128x128xbf16>
    %cst_38 = arith.constant dense<0.000000e+00> : vector<8x128xf32>
    %53 = tpu.matmul %50, %52, %cst_38 {dimension_numbers = #tpu.dot_dimension_numbers<[1], [0], [0], [1], [0, 0, 1, 1], [], []>} : vector<8x128xbf16>, vector<128x128xbf16>, vector<8x128xf32> -> vector<8x128xf32>
    %c5 = arith.constant 5 : index
    %c0_39 = arith.constant 0 : index
    %c0_40 = arith.constant 0 : index
    %54 = vector.load %arg4[%c5, %c0_39, %c0_40] : memref<6x1x128xf32, #tpu.memory_space<vmem>>, vector<1x1x128xf32>
    %55 = vector.shape_cast %54 : vector<1x1x128xf32> to vector<1x128xf32>
    %56 = vector.broadcast %55 : vector<1x128xf32> to vector<8x128xf32>
    %57 = arith.addf %53, %56 : vector<8x128xf32>
    %cst_41 = arith.constant 0.000000e+00 : f32
    %58 = vector.broadcast %cst_41 : f32 to vector<8x128xf32>
    %59 = arith.maximumf %57, %58 : vector<8x128xf32>
    %60 = vector.extract_strided_slice %59 {offsets = [0, 0], sizes = [8, 1], strides = [1, 1]} : vector<8x128xf32> to vector<8x1xf32>
    %c0_42 = arith.constant 0 : index
    %c0_43 = arith.constant 0 : index
    %61 = vector.load %arg5[%c0_42, %c0_43] : memref<8x1xf32, #tpu.memory_space<vmem>>, vector<8x1xf32>
    tpu.vector_store %arg5[%c0_42, %c0_43], %60 {strides = array<i32>} : memref<8x1xf32, #tpu.memory_space<vmem>>, vector<8x1xf32>,
    return
  }
  func.func @transform_0(%arg0: i32) -> (i32, i32) {
    %c0_i32 = arith.constant 0 : i32
    %c0_i32_0 = arith.constant 0 : i32
    return %arg0, %c0_i32 : i32, i32
  }
  func.func @transform_1(%arg0: i32) -> (i32, i32) {
    %c0_i32 = arith.constant 0 : i32
    %c0_i32_0 = arith.constant 0 : i32
    %c0_i32_1 = arith.constant 0 : i32
    return %c0_i32, %c0_i32_0 : i32, i32
  }
  func.func @transform_2(%arg0: i32) -> (i32, i32, i32) {
    %c0_i32 = arith.constant 0 : i32
    %c0_i32_0 = arith.constant 0 : i32
    %c0_i32_1 = arith.constant 0 : i32
    %c0_i32_2 = arith.constant 0 : i32
    return %c0_i32, %c0_i32_0, %c0_i32_1 : i32, i32, i32
  }
  func.func @transform_3(%arg0: i32) -> (i32, i32, i32) {
    %c0_i32 = arith.constant 0 : i32
    %c0_i32_0 = arith.constant 0 : i32
    %c0_i32_1 = arith.constant 0 : i32
    %c0_i32_2 = arith.constant 0 : i32
    return %c0_i32, %c0_i32_0, %c0_i32_1 : i32, i32, i32
  }
  func.func @transform_4(%arg0: i32) -> (i32, i32) {
    %c0_i32 = arith.constant 0 : i32
    %c0_i32_0 = arith.constant 0 : i32
    return %arg0, %c0_i32 : i32, i32
  }
}

</mosaic_0001>

<llo_original>
// kernel: tpu_custom_call.1
$region0: #{tpu_custom_call.1}
  #allocation0 [shape = 'u32[]', space=smem, size = 0x4, offset = 0x4, fixed_abs, tag = 'smem constant byte address 0x4 - core index']
  #allocation1 [shape = 'u32[144,128]{1,0:T(1,128)}', space=vmem, size = 0x12000, scoped, tag = 'internal scratch']
  %s0 = inlined_call_operand.hbm [shape: f32[8,16], index: 0, kind: input, shape index: {}]
  %s1 = inlined_call_operand.hbm [shape: bf16[16,128], index: 1, kind: input, shape index: {}]
  %s2 = inlined_call_operand.hbm [shape: bf16[5,128,128], index: 2, kind: input, shape index: {}]
  %s3 = inlined_call_operand.vmem [shape: f32[6,1,128], index: 3, kind: input, shape index: {}]
  %s4 = inlined_call_operand.vmem [shape: f32[8,1], index: 4, kind: output, shape index: {}]
  %s5 = sld [smem:[#allocation0]]
  $region38: #{tpu_custom_call.1} parent=0
    _
  %s7 = ssub.s32 1, %s5
  %s8 = scalar_select 0, %s7, %s5
  $region1: #{tpu_custom_call.1} parent=0
    #allocation2 [shape = 'u8[4096]{0}', space=vmem, size = 0x1000, scoped, tag = 'input window, operand 0, single buffered']
    #allocation3 [shape = 's32[1]{0}', space=sflag, size = 0x4, scoped, tag = 'scoped memory for tpu_custom_call.1']
    #allocation4 [shape = 'u8[4096]{0}', space=vmem, size = 0x1000, scoped, tag = 'input window, operand 1, single buffered']
    #allocation5 [shape = 's32[1]{0}', space=sflag, size = 0x4, scoped, tag = 'scoped memory for tpu_custom_call.1']
    #allocation6 [shape = 'u8[163840]{0}', space=vmem, size = 0x28000, scoped, tag = 'input window, operand 2, single buffered']
    %9 = vsyncpa [#allocation3], 0
    %10 = vsyncpa [#allocation5], 0
    // Predicated region
    $region2: #{tpu_custom_call.1} parent=1 // pred_check
      _
    $region3: #{tpu_custom_call.1} parent=1 // pred_check_branch
      %12 = sbr.rel (0) target = $region5
    $region4: #{tpu_custom_call.1} parent=1 // pred_region
      %s14 = ssub.s32 128, 128
      %15 = vsyncadd [#allocation3], %s14
      %s17 = sshll.u32 [#allocation2], 4
      %s18 = int_to_ptr.vmem [resolvable:$true] %s17
      %20 = dma.hbm_to_vmem [thread:$0]  %s0, 128, %s18, [#allocation3]
    $region5: #{tpu_custom_call.1} parent=1 // pred_fallthru
      _
    // Predicated region
    $region6: #{tpu_custom_call.1} parent=1 // pred_check
      _
    $region7: #{tpu_custom_call.1} parent=1 // pred_check_branch
      %22 = sbr.rel (0) target = $region9
    $region8: #{tpu_custom_call.1} parent=1 // pred_region
      %s24 = ssub.s32 128, 128
      %25 = vsyncadd [#allocation5], %s24
      %s26 = sshll.u32 [#allocation4], 4
      %s27 = int_to_ptr.vmem [resolvable:$true] %s26
      %32 = dma.hbm_to_vmem [thread:$0]  %s1, 128, %s27, [#allocation5], 64, 64, 4
    $region9: #{tpu_custom_call.1} parent=1 // pred_fallthru
      _
    // Predicated region
    $region10: #{tpu_custom_call.1} parent=1 // pred_check
      _
    $region11: #{tpu_custom_call.1} parent=1 // pred_check_branch
      %34 = sbr.rel (0) target = $region13
    $region12: #{tpu_custom_call.1} parent=1 // pred_region
      %s36 = ssub.s32 5120, 5120
      %37 = vsyncadd [#allocation5], %s36
      %s38 = sshll.u32 [#allocation6], 4
      %s39 = int_to_ptr.vmem [resolvable:$true] %s38
      %44 = dma.hbm_to_vmem [thread:$0]  %s2, 5120, %s39, [#allocation5], 64, 64, 4
    $region13: #{tpu_custom_call.1} parent=1 // pred_fallthru
      _
    // Predicated region
    $region14: #{tpu_custom_call.1} parent=1 // pred_check
      _
    $region15: #{tpu_custom_call.1} parent=1 // pred_check_branch
      %46 = sbr.rel (0) target = $region17
    $region16: #{tpu_custom_call.1} parent=1 // pred_region
      _
    $region17: #{tpu_custom_call.1} parent=1 // pred_fallthru
      _
    // Predicated region
    $region18: #{tpu_custom_call.1} parent=1 // pred_check
      _
    $region19: #{tpu_custom_call.1} parent=1 // pred_check_branch
      %48 = sbr.rel (0) target = $region21
    $region20: #{tpu_custom_call.1} parent=1 // pred_region
      %49 = dma.done [#allocation3], 128
    $region21: #{tpu_custom_call.1} parent=1 // pred_fallthru
      _
    // Predicated region
    $region22: #{tpu_custom_call.1} parent=1 // pred_check
      _
    $region23: #{tpu_custom_call.1} parent=1 // pred_check_branch
      %51 = sbr.rel (0) target = $region25
    $region24: #{tpu_custom_call.1} parent=1 // pred_region
      %52 = dma.done [#allocation5], 128
    $region25: #{tpu_custom_call.1} parent=1 // pred_fallthru
      _
    // Predicated region
    $region26: #{tpu_custom_call.1} parent=1 // pred_check
      _
    $region27: #{tpu_custom_call.1} parent=1 // pred_check_branch
      %54 = sbr.rel (0) target = $region29
    $region28: #{tpu_custom_call.1} parent=1 // pred_region
      %55 = dma.done [#allocation5], 5120
    $region29: #{tpu_custom_call.1} parent=1 // pred_fallthru
      _
    %v57 = vld [vmem:[#allocation2] sm:$0xff]
    %v58 = vpack.c.bf16 %v57, %v57
    %v59 = vld [vmem:[#allocation4] sm:$0xf]
    %v60 = vld [vmem:[#allocation4 + $0x4] sm:$0xf]
    %v61 = vld [vmem:[%s3] sm:$0x1]
    %v63 = vlaneseq
    %v64 = vshrl.u32 %v63, 7
    %v65 = vsub.s32 0, %v64
    %v66 = vrot.slane %v61, %v65
    %v70 = vunpack.c.l.b16 %v59
    %v71 = vunpack.c.l.b16 %v60
    %v72 = vpack.c.b16 %v71, %v70
    %vm74 = vcmask 130048
    %v76 = vsel %vm74, %v58, 0
    %78 = vmatprep.subr.bf16.mxu0 0
    %79 = vmatpush1.bf16.msra.mxu0 %v72
    %80 = vmatprep.subr.bf16.mxu0 0
    %81 = vmatpush1.bf16.msra.mxu0 0
    %82 = vmatprep.subr.bf16.mxu0 0
    %83 = vmatpush1.bf16.msra.mxu0 0
    %84 = vmatprep.subr.bf16.mxu0 0
    %85 = vmatpush1.bf16.msra.mxu0 0
    %86 = vmatprep.subr.bf16.mxu0 0
    %87 = vmatpush1.bf16.msra.mxu0 0
    %88 = vmatprep.subr.bf16.mxu0 0
    %89 = vmatpush1.bf16.msra.mxu0 0
    %90 = vmatprep.subr.bf16.mxu0 0
    %91 = vmatpush1.bf16.msra.mxu0 0
    %92 = vmatprep.subr.bf16.mxu0 0
    %93 = vmatpush1.bf16.msra.mxu0 0
    %94 = vmatprep.subr.bf16.mxu0 0
    %95 = vmatpush1.bf16.msra.mxu0 0
    %96 = vmatprep.subr.bf16.mxu0 0
    %97 = vmatpush1.bf16.msra.mxu0 0
    %98 = vmatprep.subr.bf16.mxu0 0
    %99 = vmatpush1.bf16.msra.mxu0 0
    %100 = vmatprep.subr.bf16.mxu0 0
    %101 = vmatpush1.bf16.msra.mxu0 0
    %102 = vmatprep.subr.bf16.mxu0 0
    %103 = vmatpush1.bf16.msra.mxu0 0
    %104 = vmatprep.subr.bf16.mxu0 0
    %105 = vmatpush1.bf16.msra.mxu0 0
    %106 = vmatprep.subr.bf16.mxu0 0
    %107 = vmatpush1.bf16.msra.mxu0 0
    %108 = vmatprep.subr.bf16.mxu0 0
    %109 = vmatpush1.bf16.msra.mxu0 0
    %110 = vmatprep.mubr.bf16.mxu0 0
    %111 = vmatmul.mubr.bf16.gmra.mrb[0].mxu0 %v76
    %v112 = vpop.f32.mrb[0].mxu0
    %v113 = vadd.f32 %v66, %v112
    %v114 = vpop.f32.mrb[0].mxu0
    %v115 = vpop.f32.mrb[0].mxu0
    %v116 = vpop.f32.mrb[0].mxu0
    %117 = vdwg.mxu0
    %v118 = vmax.f32 %v113, 0.0
    %v119 = vpack.c.bf16 %v118, %v118
    %v120 = vld [vmem:[#allocation6] sm:$0xf]
    %v121 = vld [vmem:[#allocation6 + $0x4] sm:$0xf]
    %v122 = vld [vmem:[#allocation6 + $0x8] sm:$0xf]
    %v123 = vld [vmem:[#allocation6 + $0xc] sm:$0xf]
    %v124 = vld [vmem:[#allocation6 + $0x10] sm:$0xf]
    %v125 = vld [vmem:[#allocation6 + $0x14] sm:$0xf]
    %v126 = vld [vmem:[#allocation6 + $0x18] sm:$0xf]
    %v127 = vld [vmem:[#allocation6 + $0x1c] sm:$0xf]
    %v128 = vld [vmem:[#allocation6 + $0x20] sm:$0xf]
    %v129 = vld [vmem:[#allocation6 + $0x24] sm:$0xf]
    %v130 = vld [vmem:[#allocation6 + $0x28] sm:$0xf]
    %v131 = vld [vmem:[#allocation6 + $0x2c] sm:$0xf]
    %v132 = vld [vmem:[#allocation6 + $0x30] sm:$0xf]
    %v133 = vld [vmem:[#allocation6 + $0x34] sm:$0xf]
    %v134 = vld [vmem:[#allocation6 + $0x38] sm:$0xf]
    %v135 = vld [vmem:[#allocation6 + $0x3c] sm:$0xf]
    %s136 = scalar_lea.vmem %s3, 1
    %v137 = vld [vmem:[%s136] sm:$0x1]
    %v139 = vlaneseq
    %v140 = vshrl.u32 %v139, 7
    %v141 = vsub.s32 0, %v140
    %v142 = vrot.slane %v137, %v141
    %v160 = vunpack.c.l.b16 %v120
    %v161 = vunpack.c.l.b16 %v121
    %v162 = vunpack.c.l.b16 %v122
    %v163 = vunpack.c.l.b16 %v123
    %v164 = vunpack.c.l.b16 %v124
    %v165 = vunpack.c.l.b16 %v125
    %v166 = vunpack.c.l.b16 %v126
    %v167 = vunpack.c.l.b16 %v127
    %v168 = vunpack.c.l.b16 %v128
    %v169 = vunpack.c.l.b16 %v129
    %v170 = vunpack.c.l.b16 %v130
    %v171 = vunpack.c.l.b16 %v131
    %v172 = vunpack.c.l.b16 %v132
    %v173 = vunpack.c.l.b16 %v133
    %v174 = vunpack.c.l.b16 %v134
    %v175 = vunpack.c.l.b16 %v135
    %v176 = vpack.c.b16 %v161, %v160
    %v177 = vpack.c.b16 %v163, %v162
    %v178 = vpack.c.b16 %v165, %v164
    %v179 = vpack.c.b16 %v167, %v166
    %v180 = vpack.c.b16 %v169, %v168
    %v181 = vpack.c.b16 %v171, %v170
    %v182 = vpack.c.b16 %v173, %v172
    %v183 = vpack.c.b16 %v175, %v174
    %192 = vmatprep.subr.bf16.mxu0 0
    %193 = vmatpush1.bf16.msra.mxu0 %v176
    %194 = vmatprep.subr.bf16.mxu0 0
    %195 = vmatpush1.bf16.msra.mxu0 %v177
    %196 = vmatprep.subr.bf16.mxu0 0
    %197 = vmatpush1.bf16.msra.mxu0 %v178
    %198 = vmatprep.subr.bf16.mxu0 0
    %199 = vmatpush1.bf16.msra.mxu0 %v179
    %200 = vmatprep.subr.bf16.mxu0 0
    %201 = vmatpush1.bf16.msra.mxu0 %v180
    %202 = vmatprep.subr.bf16.mxu0 0
    %203 = vmatpush1.bf16.msra.mxu0 %v181
    %204 = vmatprep.subr.bf16.mxu0 0
    %205 = vmatpush1.bf16.msra.mxu0 %v182
    %206 = vmatprep.subr.bf16.mxu0 0
    %207 = vmatpush1.bf16.msra.mxu0 %v183
    %208 = vmatprep.subr.bf16.mxu0 0
    %209 = vmatpush1.bf16.msra.mxu0 0
    %210 = vmatprep.subr.bf16.mxu0 0
    %211 = vmatpush1.bf16.msra.mxu0 0
    %212 = vmatprep.subr.bf16.mxu0 0
    %213 = vmatpush1.bf16.msra.mxu0 0
    %214 = vmatprep.subr.bf16.mxu0 0
    %215 = vmatpush1.bf16.msra.mxu0 0
    %216 = vmatprep.subr.bf16.mxu0 0
    %217 = vmatpush1.bf16.msra.mxu0 0
    %218 = vmatprep.subr.bf16.mxu0 0
    %219 = vmatpush1.bf16.msra.mxu0 0
    %220 = vmatprep.subr.bf16.mxu0 0
    %221 = vmatpush1.bf16.msra.mxu0 0
    %222 = vmatprep.subr.bf16.mxu0 0
    %223 = vmatpush1.bf16.msra.mxu0 0
    %224 = vmatprep.mubr.bf16.mxu0 0
    %225 = vmatmul.mubr.bf16.gmra.mrb[0].mxu0 %v119
    %v226 = vpop.f32.mrb[0].mxu0
    %v227 = vadd.f32 %v142, %v226
    %v228 = vpop.f32.mrb[0].mxu0
    %v229 = vpop.f32.mrb[0].mxu0
    %v230 = vpop.f32.mrb[0].mxu0
    %231 = vdwg.mxu0
    %v232 = vmax.f32 %v227, 0.0
    %v233 = vpack.c.bf16 %v232, %v232
    %s234 = scalar_lea.vmem [#allocation6], 64
    %v235 = vld [vmem:[%s234] sm:$0xf]
    %v236 = vld [vmem:[%s234 + $0x4] sm:$0xf]
    %v237 = vld [vmem:[%s234 + $0x8] sm:$0xf]
    %v238 = vld [vmem:[%s234 + $0xc] sm:$0xf]
    %v239 = vld [vmem:[%s234 + $0x10] sm:$0xf]
    %v240 = vld [vmem:[%s234 + $0x14] sm:$0xf]
    %v241 = vld [vmem:[%s234 + $0x18] sm:$0xf]
    %v242 = vld [vmem:[%s234 + $0x1c] sm:$0xf]
    %v243 = vld [vmem:[%s234 + $0x20] sm:$0xf]
    %v244 = vld [vmem:[%s234 + $0x24] sm:$0xf]
    %v245 = vld [vmem:[%s234 + $0x28] sm:$0xf]
    %v246 = vld [vmem:[%s234 + $0x2c] sm:$0xf]
    %v247 = vld [vmem:[%s234 + $0x30] sm:$0xf]
    %v248 = vld [vmem:[%s234 + $0x34] sm:$0xf]
    %v249 = vld [vmem:[%s234 + $0x38] sm:$0xf]
    %v250 = vld [vmem:[%s234 + $0x3c] sm:$0xf]
    %s251 = scalar_lea.vmem %s3, 2
    %v252 = vld [vmem:[%s251] sm:$0x1]
    %v254 = vlaneseq
    %v255 = vshrl.u32 %v254, 7
    %v256 = vsub.s32 0, %v255
    %v257 = vrot.slane %v252, %v256
    %v275 = vunpack.c.l.b16 %v235
    %v276 = vunpack.c.l.b16 %v236
    %v277 = vunpack.c.l.b16 %v237
    %v278 = vunpack.c.l.b16 %v238
    %v279 = vunpack.c.l.b16 %v239
    %v280 = vunpack.c.l.b16 %v240
    %v281 = vunpack.c.l.b16 %v241
    %v282 = vunpack.c.l.b16 %v242
    %v283 = vunpack.c.l.b16 %v243
    %v284 = vunpack.c.l.b16 %v244
    %v285 = vunpack.c.l.b16 %v245
    %v286 = vunpack.c.l.b16 %v246
    %v287 = vunpack.c.l.b16 %v247
    %v288 = vunpack.c.l.b16 %v248
    %v289 = vunpack.c.l.b16 %v249
    %v290 = vunpack.c.l.b16 %v250
    %v291 = vpack.c.b16 %v276, %v275
    %v292 = vpack.c.b16 %v278, %v277
    %v293 = vpack.c.b16 %v280, %v279
    %v294 = vpack.c.b16 %v282, %v281
    %v295 = vpack.c.b16 %v284, %v283
    %v296 = vpack.c.b16 %v286, %v285
    %v297 = vpack.c.b16 %v288, %v287
    %v298 = vpack.c.b16 %v290, %v289
    %307 = vmatprep.subr.bf16.mxu0 0
    %308 = vmatpush1.bf16.msra.mxu0 %v291
    %309 = vmatprep.subr.bf16.mxu0 0
    %310 = vmatpush1.bf16.msra.mxu0 %v292
    %311 = vmatprep.subr.bf16.mxu0 0
    %312 = vmatpush1.bf16.msra.mxu0 %v293
    %313 = vmatprep.subr.bf16.mxu0 0
    %314 = vmatpush1.bf16.msra.mxu0 %v294
    %315 = vmatprep.subr.bf16.mxu0 0
    %316 = vmatpush1.bf16.msra.mxu0 %v295
    %317 = vmatprep.subr.bf16.mxu0 0
    %318 = vmatpush1.bf16.msra.mxu0 %v296
    %319 = vmatprep.subr.bf16.mxu0 0
    %320 = vmatpush1.bf16.msra.mxu0 %v297
    %321 = vmatprep.subr.bf16.mxu0 0
    %322 = vmatpush1.bf16.msra.mxu0 %v298
    %323 = vmatprep.subr.bf16.mxu0 0
    %324 = vmatpush1.bf16.msra.mxu0 0
    %325 = vmatprep.subr.bf16.mxu0 0
    %326 = vmatpush1.bf16.msra.mxu0 0
    %327 = vmatprep.subr.bf16.mxu0 0
    %328 = vmatpush1.bf16.msra.mxu0 0
    %329 = vmatprep.subr.bf16.mxu0 0
    %330 = vmatpush1.bf16.msra.mxu0 0
    %331 = vmatprep.subr.bf16.mxu0 0
    %332 = vmatpush1.bf16.msra.mxu0 0
    %333 = vmatprep.subr.bf16.mxu0 0
    %334 = vmatpush1.bf16.msra.mxu0 0
    %335 = vmatprep.subr.bf16.mxu0 0
    %336 = vmatpush1.bf16.msra.mxu0 0
    %337 = vmatprep.subr.bf16.mxu0 0
    %338 = vmatpush1.bf16.msra.mxu0 0
    %339 = vmatprep.mubr.bf16.mxu0 0
    %340 = vmatmul.mubr.bf16.gmra.mrb[0].mxu0 %v233
    %v341 = vpop.f32.mrb[0].mxu0
    %v342 = vadd.f32 %v257, %v341
    %v343 = vpop.f32.mrb[0].mxu0
    %v344 = vpop.f32.mrb[0].mxu0
    %v345 = vpop.f32.mrb[0].mxu0
    %346 = vdwg.mxu0
    %v347 = vmax.f32 %v342, 0.0
    %v348 = vpack.c.bf16 %v347, %v347
    %s349 = scalar_lea.vmem [#allocation6], 128
    %v350 = vld [vmem:[%s349] sm:$0xf]
    %v351 = vld [vmem:[%s349 + $0x4] sm:$0xf]
    %v352 = vld [vmem:[%s349 + $0x8] sm:$0xf]
    %v353 = vld [vmem:[%s349 + $0xc] sm:$0xf]
    %v354 = vld [vmem:[%s349 + $0x10] sm:$0xf]
    %v355 = vld [vmem:[%s349 + $0x14] sm:$0xf]
    %v356 = vld [vmem:[%s349 + $0x18] sm:$0xf]
    %v357 = vld [vmem:[%s349 + $0x1c] sm:$0xf]
    %v358 = vld [vmem:[%s349 + $0x20] sm:$0xf]
    %v359 = vld [vmem:[%s349 + $0x24] sm:$0xf]
    %v360 = vld [vmem:[%s349 + $0x28] sm:$0xf]
    %v361 = vld [vmem:[%s349 + $0x2c] sm:$0xf]
    %v362 = vld [vmem:[%s349 + $0x30] sm:$0xf]
    %v363 = vld [vmem:[%s349 + $0x34] sm:$0xf]
    %v364 = vld [vmem:[%s349 + $0x38] sm:$0xf]
    %v365 = vld [vmem:[%s349 + $0x3c] sm:$0xf]
    %s366 = scalar_lea.vmem %s3, 3
    %v367 = vld [vmem:[%s366] sm:$0x1]
    %v369 = vlaneseq
    %v370 = vshrl.u32 %v369, 7
    %v371 = vsub.s32 0, %v370
    %v372 = vrot.slane %v367, %v371
    %v390 = vunpack.c.l.b16 %v350
    %v391 = vunpack.c.l.b16 %v351
    %v392 = vunpack.c.l.b16 %v352
    %v393 = vunpack.c.l.b16 %v353
    %v394 = vunpack.c.l.b16 %v354
    %v395 = vunpack.c.l.b16 %v355
    %v396 = vunpack.c.l.b16 %v356
    %v397 = vunpack.c.l.b16 %v357
    %v398 = vunpack.c.l.b16 %v358
    %v399 = vunpack.c.l.b16 %v359
    %v400 = vunpack.c.l.b16 %v360
    %v401 = vunpack.c.l.b16 %v361
    %v402 = vunpack.c.l.b16 %v362
    %v403 = vunpack.c.l.b16 %v363
    %v404 = vunpack.c.l.b16 %v364
    %v405 = vunpack.c.l.b16 %v365
    %v406 = vpack.c.b16 %v391, %v390
    %v407 = vpack.c.b16 %v393, %v392
    %v408 = vpack.c.b16 %v395, %v394
    %v409 = vpack.c.b16 %v397, %v396
    %v410 = vpack.c.b16 %v399, %v398
    %v411 = vpack.c.b16 %v401, %v400
    %v412 = vpack.c.b16 %v403, %v402
    %v413 = vpack.c.b16 %v405, %v404
    %422 = vmatprep.subr.bf16.mxu0 0
    %423 = vmatpush1.bf16.msra.mxu0 %v406
    %424 = vmatprep.subr.bf16.mxu0 0
    %425 = vmatpush1.bf16.msra.mxu0 %v407
    %426 = vmatprep.subr.bf16.mxu0 0
    %427 = vmatpush1.bf16.msra.mxu0 %v408
    %428 = vmatprep.subr.bf16.mxu0 0
    %429 = vmatpush1.bf16.msra.mxu0 %v409
    %430 = vmatprep.subr.bf16.mxu0 0
    %431 = vmatpush1.bf16.msra.mxu0 %v410
    %432 = vmatprep.subr.bf16.mxu0 0
    %433 = vmatpush1.bf16.msra.mxu0 %v411
    %434 = vmatprep.subr.bf16.mxu0 0
    %435 = vmatpush1.bf16.msra.mxu0 %v412
    %436 = vmatprep.subr.bf16.mxu0 0
    %437 = vmatpush1.bf16.msra.mxu0 %v413
    %438 = vmatprep.subr.bf16.mxu0 0
    %439 = vmatpush1.bf16.msra.mxu0 0
    %440 = vmatprep.subr.bf16.mxu0 0
    %441 = vmatpush1.bf16.msra.mxu0 0
    %442 = vmatprep.subr.bf16.mxu0 0
    %443 = vmatpush1.bf16.msra.mxu0 0
    %444 = vmatprep.subr.bf16.mxu0 0
    %445 = vmatpush1.bf16.msra.mxu0 0
    %446 = vmatprep.subr.bf16.mxu0 0
    %447 = vmatpush1.bf16.msra.mxu0 0
    %448 = vmatprep.subr.bf16.mxu0 0
    %449 = vmatpush1.bf16.msra.mxu0 0
    %450 = vmatprep.subr.bf16.mxu0 0
    %451 = vmatpush1.bf16.msra.mxu0 0
    %452 = vmatprep.subr.bf16.mxu0 0
    %453 = vmatpush1.bf16.msra.mxu0 0
    %454 = vmatprep.mubr.bf16.mxu0 0
    %455 = vmatmul.mubr.bf16.gmra.mrb[0].mxu0 %v348
    %v456 = vpop.f32.mrb[0].mxu0
    %v457 = vadd.f32 %v372, %v456
    %v458 = vpop.f32.mrb[0].mxu0
    %v459 = vpop.f32.mrb[0].mxu0
    %v460 = vpop.f32.mrb[0].mxu0
    %461 = vdwg.mxu0
    %v462 = vmax.f32 %v457, 0.0
    %v463 = vpack.c.bf16 %v462, %v462
    %s464 = scalar_lea.vmem [#allocation6], 192
    %v465 = vld [vmem:[%s464] sm:$0xf]
    %v466 = vld [vmem:[%s464 + $0x4] sm:$0xf]
    %v467 = vld [vmem:[%s464 + $0x8] sm:$0xf]
    %v468 = vld [vmem:[%s464 + $0xc] sm:$0xf]
    %v469 = vld [vmem:[%s464 + $0x10] sm:$0xf]
    %v470 = vld [vmem:[%s464 + $0x14] sm:$0xf]
    %v471 = vld [vmem:[%s464 + $0x18] sm:$0xf]
    %v472 = vld [vmem:[%s464 + $0x1c] sm:$0xf]
    %v473 = vld [vmem:[%s464 + $0x20] sm:$0xf]
    %v474 = vld [vmem:[%s464 + $0x24] sm:$0xf]
    %v475 = vld [vmem:[%s464 + $0x28] sm:$0xf]
    %v476 = vld [vmem:[%s464 + $0x2c] sm:$0xf]
    %v477 = vld [vmem:[%s464 + $0x30] sm:$0xf]
    %v478 = vld [vmem:[%s464 + $0x34] sm:$0xf]
    %v479 = vld [vmem:[%s464 + $0x38] sm:$0xf]
    %v480 = vld [vmem:[%s464 + $0x3c] sm:$0xf]
    %s481 = scalar_lea.vmem %s3, 4
    %v482 = vld [vmem:[%s481] sm:$0x1]
    %v484 = vlaneseq
    %v485 = vshrl.u32 %v484, 7
    %v486 = vsub.s32 0, %v485
    %v487 = vrot.slane %v482, %v486
    %v505 = vunpack.c.l.b16 %v465
    %v506 = vunpack.c.l.b16 %v466
    %v507 = vunpack.c.l.b16 %v467
    %v508 = vunpack.c.l.b16 %v468
    %v509 = vunpack.c.l.b16 %v469
    %v510 = vunpack.c.l.b16 %v470
    %v511 = vunpack.c.l.b16 %v471
    %v512 = vunpack.c.l.b16 %v472
    %v513 = vunpack.c.l.b16 %v473
    %v514 = vunpack.c.l.b16 %v474
    %v515 = vunpack.c.l.b16 %v475
    %v516 = vunpack.c.l.b16 %v476
    %v517 = vunpack.c.l.b16 %v477
    %v518 = vunpack.c.l.b16 %v478
    %v519 = vunpack.c.l.b16 %v479
    %v520 = vunpack.c.l.b16 %v480
    %v521 = vpack.c.b16 %v506, %v505
    %v522 = vpack.c.b16 %v508, %v507
    %v523 = vpack.c.b16 %v510, %v509
    %v524 = vpack.c.b16 %v512, %v511
    %v525 = vpack.c.b16 %v514, %v513
    %v526 = vpack.c.b16 %v516, %v515
    %v527 = vpack.c.b16 %v518, %v517
    %v528 = vpack.c.b16 %v520, %v519
    %537 = vmatprep.subr.bf16.mxu0 0
    %538 = vmatpush1.bf16.msra.mxu0 %v521
    %539 = vmatprep.subr.bf16.mxu0 0
    %540 = vmatpush1.bf16.msra.mxu0 %v522
    %541 = vmatprep.subr.bf16.mxu0 0
    %542 = vmatpush1.bf16.msra.mxu0 %v523
    %543 = vmatprep.subr.bf16.mxu0 0
    %544 = vmatpush1.bf16.msra.mxu0 %v524
    %545 = vmatprep.subr.bf16.mxu0 0
    %546 = vmatpush1.bf16.msra.mxu0 %v525
    %547 = vmatprep.subr.bf16.mxu0 0
    %548 = vmatpush1.bf16.msra.mxu0 %v526
    %549 = vmatprep.subr.bf16.mxu0 0
    %550 = vmatpush1.bf16.msra.mxu0 %v527
    %551 = vmatprep.subr.bf16.mxu0 0
    %552 = vmatpush1.bf16.msra.mxu0 %v528
    %553 = vmatprep.subr.bf16.mxu0 0
    %554 = vmatpush1.bf16.msra.mxu0 0
    %555 = vmatprep.subr.bf16.mxu0 0
    %556 = vmatpush1.bf16.msra.mxu0 0
    %557 = vmatprep.subr.bf16.mxu0 0
    %558 = vmatpush1.bf16.msra.mxu0 0
    %559 = vmatprep.subr.bf16.mxu0 0
    %560 = vmatpush1.bf16.msra.mxu0 0
    %561 = vmatprep.subr.bf16.mxu0 0
    %562 = vmatpush1.bf16.msra.mxu0 0
    %563 = vmatprep.subr.bf16.mxu0 0
    %564 = vmatpush1.bf16.msra.mxu0 0
    %565 = vmatprep.subr.bf16.mxu0 0
    %566 = vmatpush1.bf16.msra.mxu0 0
    %567 = vmatprep.subr.bf16.mxu0 0
    %568 = vmatpush1.bf16.msra.mxu0 0
    %569 = vmatprep.mubr.bf16.mxu0 0
    %570 = vmatmul.mubr.bf16.gmra.mrb[0].mxu0 %v463
    %v571 = vpop.f32.mrb[0].mxu0
    %v572 = vadd.f32 %v487, %v571
    %v573 = vpop.f32.mrb[0].mxu0
    %v574 = vpop.f32.mrb[0].mxu0
    %v575 = vpop.f32.mrb[0].mxu0
    %576 = vdwg.mxu0
    %v577 = vmax.f32 %v572, 0.0
    %v578 = vpack.c.bf16 %v577, %v577
    %s579 = scalar_lea.vmem [#allocation6], 256
    %v580 = vld [vmem:[%s579] sm:$0xf]
    %v581 = vld [vmem:[%s579 + $0x4] sm:$0xf]
    %v582 = vld [vmem:[%s579 + $0x8] sm:$0xf]
    %v583 = vld [vmem:[%s579 + $0xc] sm:$0xf]
    %v584 = vld [vmem:[%s579 + $0x10] sm:$0xf]
    %v585 = vld [vmem:[%s579 + $0x14] sm:$0xf]
    %v586 = vld [vmem:[%s579 + $0x18] sm:$0xf]
    %v587 = vld [vmem:[%s579 + $0x1c] sm:$0xf]
    %v588 = vld [vmem:[%s579 + $0x20] sm:$0xf]
    %v589 = vld [vmem:[%s579 + $0x24] sm:$0xf]
    %v590 = vld [vmem:[%s579 + $0x28] sm:$0xf]
    %v591 = vld [vmem:[%s579 + $0x2c] sm:$0xf]
    %v592 = vld [vmem:[%s579 + $0x30] sm:$0xf]
    %v593 = vld [vmem:[%s579 + $0x34] sm:$0xf]
    %v594 = vld [vmem:[%s579 + $0x38] sm:$0xf]
    %v595 = vld [vmem:[%s579 + $0x3c] sm:$0xf]
    %s596 = scalar_lea.vmem %s3, 5
    %v597 = vld [vmem:[%s596] sm:$0x1]
    %v599 = vlaneseq
    %v600 = vshrl.u32 %v599, 7
    %v601 = vsub.s32 0, %v600
    %v602 = vrot.slane %v597, %v601
    %v620 = vunpack.c.l.b16 %v580
    %v621 = vunpack.c.l.b16 %v581
    %v622 = vunpack.c.l.b16 %v582
    %v623 = vunpack.c.l.b16 %v583
    %v624 = vunpack.c.l.b16 %v584
    %v625 = vunpack.c.l.b16 %v585
    %v626 = vunpack.c.l.b16 %v586
    %v627 = vunpack.c.l.b16 %v587
    %v628 = vunpack.c.l.b16 %v588
    %v629 = vunpack.c.l.b16 %v589
    %v630 = vunpack.c.l.b16 %v590
    %v631 = vunpack.c.l.b16 %v591
    %v632 = vunpack.c.l.b16 %v592
    %v633 = vunpack.c.l.b16 %v593
    %v634 = vunpack.c.l.b16 %v594
    %v635 = vunpack.c.l.b16 %v595
    %v636 = vpack.c.b16 %v621, %v620
    %v637 = vpack.c.b16 %v623, %v622
    %v638 = vpack.c.b16 %v625, %v624
    %v639 = vpack.c.b16 %v627, %v626
    %v640 = vpack.c.b16 %v629, %v628
    %v641 = vpack.c.b16 %v631, %v630
    %v642 = vpack.c.b16 %v633, %v632
    %v643 = vpack.c.b16 %v635, %v634
    %652 = vmatprep.subr.bf16.mxu0 0
    %653 = vmatpush1.bf16.msra.mxu0 %v636
    %654 = vmatprep.subr.bf16.mxu0 0
    %655 = vmatpush1.bf16.msra.mxu0 %v637
    %656 = vmatprep.subr.bf16.mxu0 0
    %657 = vmatpush1.bf16.msra.mxu0 %v638
    %658 = vmatprep.subr.bf16.mxu0 0
    %659 = vmatpush1.bf16.msra.mxu0 %v639
    %660 = vmatprep.subr.bf16.mxu0 0
    %661 = vmatpush1.bf16.msra.mxu0 %v640
    %662 = vmatprep.subr.bf16.mxu0 0
    %663 = vmatpush1.bf16.msra.mxu0 %v641
    %664 = vmatprep.subr.bf16.mxu0 0
    %665 = vmatpush1.bf16.msra.mxu0 %v642
    %666 = vmatprep.subr.bf16.mxu0 0
    %667 = vmatpush1.bf16.msra.mxu0 %v643
    %668 = vmatprep.subr.bf16.mxu0 0
    %669 = vmatpush1.bf16.msra.mxu0 0
    %670 = vmatprep.subr.bf16.mxu0 0
    %671 = vmatpush1.bf16.msra.mxu0 0
    %672 = vmatprep.subr.bf16.mxu0 0
    %673 = vmatpush1.bf16.msra.mxu0 0
    %674 = vmatprep.subr.bf16.mxu0 0
    %675 = vmatpush1.bf16.msra.mxu0 0
    %676 = vmatprep.subr.bf16.mxu0 0
    %677 = vmatpush1.bf16.msra.mxu0 0
    %678 = vmatprep.subr.bf16.mxu0 0
    %679 = vmatpush1.bf16.msra.mxu0 0
    %680 = vmatprep.subr.bf16.mxu0 0
    %681 = vmatpush1.bf16.msra.mxu0 0
    %682 = vmatprep.subr.bf16.mxu0 0
    %683 = vmatpush1.bf16.msra.mxu0 0
    %684 = vmatprep.mubr.bf16.mxu0 0
    %685 = vmatmul.mubr.bf16.gmra.mrb[0].mxu0 %v578
    %v686 = vpop.f32.mrb[0].mxu0
    %v687 = vadd.f32 %v602, %v686
    %v688 = vpop.f32.mrb[0].mxu0
    %v689 = vpop.f32.mrb[0].mxu0
    %v690 = vpop.f32.mrb[0].mxu0
    %691 = vdwg.mxu0
    %v692 = vmax.f32 %v687, 0.0
    %vm693 = vcmask 7168
    %694 = vst.msk [vmem:[%s4] sm:$0xff] %vm693, %v692
    // Predicated region
    $region30: #{tpu_custom_call.1} parent=1 // pred_check
      _
    $region31: #{tpu_custom_call.1} parent=1 // pred_check_branch
      %696 = sbr.rel (0) target = $region33
    $region32: #{tpu_custom_call.1} parent=1 // pred_region
      _
    $region33: #{tpu_custom_call.1} parent=1 // pred_fallthru
      _
    // Predicated region
    $region34: #{tpu_custom_call.1} parent=1 // pred_check
      _
    $region35: #{tpu_custom_call.1} parent=1 // pred_check_branch
      %698 = sbr.rel (0) target = $region37
    $region36: #{tpu_custom_call.1} parent=1 // pred_region
      _
    $region37: #{tpu_custom_call.1} parent=1 // pred_fallthru
      _
    %699 = vsyncpa [#allocation3], 1
    %700 = vsyncpa [#allocation5], 1

</llo_original>
